<compile_context>
chip_gen: v6e
topology: v6e:2x2x1
jax: 0.10.0
libtpu: 0.0.40
codegen_flags: <defaults>
</compile_context>

<pallas_src>
import functools

import jax
import jax.numpy as jnp
from jax.experimental import pallas as pl
from jax.experimental.pallas import tpu as pltpu


def _round_up(x, m):
    return ((x + m - 1) // m) * m


def _pick_tile(extent, target):
    """Largest multiple-of-128 divisor of `extent` that is <= target."""
    best = 128
    cand = 128
    limit = min(target, extent)
    while cand <= limit:
        if extent % cand == 0:
            best = cand
        cand += 128
    return best


def _gcn_adj_kernel(adj_ref, sup_ref, out_ref, *scratch, support_resident, tk):
    """One (row-tile, contraction-tile) step of output = adjacency @ support."""
    k = pl.program_id(1)
    # f32 outputs accumulate directly into the VMEM-resident output block.
    acc_ref = scratch[0] if scratch else out_ref

    if support_resident:
        start = pl.multiple_of(k * tk, 128)
        sup = sup_ref[pl.ds(start, tk), :]
    else:
        sup = sup_ref[...]

    contrib = jnp.dot(adj_ref[...], sup, preferred_element_type=jnp.float32)

    @pl.when(k == 0)
    def _():
        acc_ref[...] = contrib

    @pl.when(k > 0)
    def _():
        acc_ref[...] += contrib

    if scratch:  # non-f32 output: flush the f32 scratch at the last k step
        @pl.when(k == pl.num_programs(1) - 1)
        def _():
            out_ref[...] = acc_ref[...].astype(out_ref.dtype)


def graph_convolution(adjacency, input_feature, weight, *,
                      tm=512, tk=2048, use_bf16=False):
    """output = adjacency @ (input_feature @ weight)   (GCN layer forward)."""
    N, N2 = adjacency.shape
    assert N == N2
    Nx, D = input_feature.shape
    assert Nx == N
    Dw, F = weight.shape
    assert Dw == D

    NP = _round_up(N, 128)      # 128-padded node extent
    FP = _round_up(F, 128)      # lane-dense output width

    out_dtype = input_feature.dtype
    compute_dtype = jnp.bfloat16 if use_bf16 else jnp.result_type(
        adjacency.dtype, input_feature.dtype, weight.dtype)
    cd_size = jnp.dtype(compute_dtype).itemsize
    out_size = jnp.dtype(out_dtype).itemsize

    # --- hoisted support = x @ w (tiny; plain XLA matmul, f32 accuracy) ------
    x_p = input_feature
    if NP != N:
        x_p = jnp.pad(input_feature, ((0, NP - N), (0, 0)))
    w_p = weight
    if FP != F:
        w_p = jnp.pad(weight, ((0, 0), (0, FP - F)))
    support = jnp.dot(x_p, w_p, preferred_element_type=jnp.float32,
                      precision=jax.lax.Precision.HIGHEST)
    support = support.astype(compute_dtype)

    # --- adjacency: pad only to a multiple of 128 (never to tile multiples) --
    adj_p = adjacency
    if NP != N:
        adj_p = jnp.pad(adjacency, ((0, NP - N), (0, NP - N)))
    adj_p = adj_p.astype(compute_dtype)

    # --- tile selection: divisors of NP; keep >= 2 row tiles for megacore ----
    TM = _pick_tile(NP, min(tm, NP))
    if NP // TM < 2 and NP >= 256:
        TM = _pick_tile(NP, NP // 2)
    TK = _pick_tile(NP, min(tk, NP))
    grid = (NP // TM, NP // TK)

    # Keep the (small) support matrix fully VMEM-resident when it fits.
    support_resident = NP * FP * cd_size <= (4 << 20)
    if support_resident:
        sup_spec = pl.BlockSpec((NP, FP), lambda i, k: (0, 0))
        sup_buf_bytes = 2 * NP * FP * cd_size
    else:
        sup_spec = pl.BlockSpec((TK, FP), lambda i, k: (k, 0))
        sup_buf_bytes = 2 * TK * FP * cd_size

    use_scratch = out_dtype != jnp.float32
    scratch_shapes = [pltpu.VMEM((TM, FP), jnp.float32)] if use_scratch else []

    # Explicit VMEM budget from the actual footprint (v7x has 64 MiB physical).
    vmem_est = (2 * TM * TK * cd_size + sup_buf_bytes + 2 * TM * FP * out_size
                + (TM * FP * 4 if use_scratch else 0))
    vmem_limit = int(min(max(vmem_est + (8 << 20), 32 << 20), 48 << 20))

    cost = pl.CostEstimate(
        flops=2 * NP * NP * FP,
        bytes_accessed=(NP * NP * cd_size
                        + (1 if support_resident else grid[0]) * NP * FP * cd_size
                        + NP * FP * out_size),
        transcendentals=0,
    )

    kernel = functools.partial(_gcn_adj_kernel,
                               support_resident=support_resident, tk=TK)

    out_padded = pl.pallas_call(
        kernel,
        out_shape=jax.ShapeDtypeStruct((NP, FP), out_dtype),
        grid_spec=pltpu.PrefetchScalarGridSpec(
            num_scalar_prefetch=0,
            grid=grid,
            in_specs=[
                pl.BlockSpec((TM, TK), lambda i, k: (i, k)),   # adjacency tile
                sup_spec,                                      # support
            ],
            out_specs=pl.BlockSpec((TM, FP), lambda i, k: (i, 0)),
            scratch_shapes=scratch_shapes,
        ),
        compiler_params=pltpu.CompilerParams(
            dimension_semantics=("parallel", "arbitrary"),
            vmem_limit_bytes=vmem_limit),
        cost_estimate=cost,
    )(adj_p, support)

    return out_padded[:N, :F]


if __name__ == "__main__":
    # Small, deterministic example matching the module's forward.
    num_nodes = 128     # N
    input_dim = 64      # D
    output_dim = 32     # F

    key = jax.random.PRNGKey(0)
    k_adj, k_x, k_w = jax.random.split(key, 3)

    # Dense row-normalized adjacency with self loops (torch.sparse.mm is
    # semantically a dense matmul; implemented densely here).
    raw = (jax.random.uniform(k_adj, (num_nodes, num_nodes)) < 0.1).astype(jnp.float32)
    adj = raw + jnp.eye(num_nodes, dtype=jnp.float32)
    adj = adj / jnp.sum(adj, axis=1, keepdims=True)

    x = jax.random.normal(k_x, (num_nodes, input_dim), dtype=jnp.float32)

    bound = 1.0 / jnp.sqrt(jnp.float32(input_dim))
    weight = jax.random.uniform(k_w, (input_dim, output_dim), dtype=jnp.float32,
                                minval=-bound, maxval=bound)

    out = jax.block_until_ready(graph_convolution(adj, x, weight))
    ref = adj @ (x @ weight)
    assert out.shape == (num_nodes, output_dim)
    assert jnp.allclose(out, ref, atol=1e-4, rtol=1e-4), "f32 mismatch vs reference"

    # bf16-in-HBM fast path (adjacency/support stored bf16; f32 accumulation).
    out_bf16 = jax.block_until_ready(graph_convolution(adj, x, weight, use_bf16=True))
    assert jnp.allclose(out_bf16, ref, atol=3e-2, rtol=3e-2), "bf16 mismatch"

    # Ragged shape (N not a multiple of 128) exercises the 128-only padding
    # path and the >=2 row-tile split.
    n2, d2, f2 = 200, 48, 24
    k1, k2, k3 = jax.random.split(jax.random.PRNGKey(1), 3)
    adj2 = (jax.random.uniform(k1, (n2, n2)) < 0.2).astype(jnp.float32) + jnp.eye(n2)
    adj2 = adj2 / jnp.sum(adj2, axis=1, keepdims=True)
    x2 = jax.random.normal(k2, (n2, d2), dtype=jnp.float32)
    w2 = jax.random.normal(k3, (d2, f2), dtype=jnp.float32) * 0.1
    out2 = jax.block_until_ready(graph_convolution(adj2, x2, w2))
    ref2 = adj2 @ (x2 @ w2)
    assert out2.shape == (n2, f2)
    assert jnp.allclose(out2, ref2, atol=1e-4, rtol=1e-3), "ragged mismatch"

    print("KERNEL_OK")
</pallas_src>

<mosaic_0001>
module attributes {stable_mosaic.version = 11 : i64} {
  func.func @_gcn_adj_kernel(%arg0: i32, %arg1: i32, %arg2: memref<128x128xf32, #tpu.memory_space<vmem>>, %arg3: memref<128x128xf32, #tpu.memory_space<vmem>>, %arg4: memref<128x128xf32, #tpu.memory_space<vmem>>) attributes {dimension_semantics = [#tpu.dimension_semantics<parallel>, #tpu.dimension_semantics<arbitrary>], iteration_bounds = array<i64: 1, 1>, scalar_prefetch = 0 : i64, scratch_operands = 0 : i64, tpu.core_type = #tpu.core_type<tc>, window_params = [{transform_indices = @transform_0, window_bounds = array<i64: 128, 128>}, {pipeline_mode = #tpu.pipeline_mode<synchronous>, transform_indices = @transform_1, window_bounds = array<i64: 128, 128>}, {transform_indices = @transform_2, window_bounds = array<i64: 128, 128>}]} {
    %c128_i32 = arith.constant 128 : i32
    %0 = arith.muli %arg1, %c128_i32 : i32
    %1 = tpu.assume_multiple %0, 128 : i32
    %2 = arith.index_cast %1 : i32 to index
    %c0 = arith.constant 0 : index
    %3 = vector.load %arg3[%2, %c0] : memref<128x128xf32, #tpu.memory_space<vmem>>, vector<128x128xf32>
    %c0_0 = arith.constant 0 : index
    %c0_1 = arith.constant 0 : index
    %4 = vector.load %arg2[%c0_0, %c0_1] : memref<128x128xf32, #tpu.memory_space<vmem>>, vector<128x128xf32>
    %cst = arith.constant dense<0.000000e+00> : vector<128x128xf32>
    %5 = tpu.matmul %4, %3, %cst {dimension_numbers = #tpu.dot_dimension_numbers<[1], [0], [0], [1], [0, 0, 1, 1], [], []>} : vector<128x128xf32>, vector<128x128xf32>, vector<128x128xf32> -> vector<128x128xf32>
    %c0_i32 = arith.constant 0 : i32
    %6 = arith.cmpi eq, %arg1, %c0_i32 : i32
    %7 = arith.extui %6 : i1 to i32
    %c0_i32_2 = arith.constant 0 : i32
    %8 = arith.cmpi ne, %7, %c0_i32_2 : i32
    scf.if %8 {
      %c0_5 = arith.constant 0 : index
      %c0_6 = arith.constant 0 : index
      %12 = vector.load %arg4[%c0_5, %c0_6] : memref<128x128xf32, #tpu.memory_space<vmem>>, vector<128x128xf32>
      tpu.vector_store %arg4[%c0_5, %c0_6], %5 {strides = array<i32>} : memref<128x128xf32, #tpu.memory_space<vmem>>, vector<128x128xf32>,
    } else {
    }
    %c0_i32_3 = arith.constant 0 : i32
    %9 = arith.cmpi sgt, %arg1, %c0_i32_3 : i32
    %10 = arith.extui %9 : i1 to i32
    %c0_i32_4 = arith.constant 0 : i32
    %11 = arith.cmpi ne, %10, %c0_i32_4 : i32
    scf.if %11 {
      %c0_5 = arith.constant 0 : index
      %c0_6 = arith.constant 0 : index
      %12 = vector.load %arg4[%c0_5, %c0_6] : memref<128x128xf32, #tpu.memory_space<vmem>>, vector<128x128xf32>
      %13 = arith.addf %12, %5 : vector<128x128xf32>
      %c0_7 = arith.constant 0 : index
      %c0_8 = arith.constant 0 : index
      %14 = vector.load %arg4[%c0_7, %c0_8] : memref<128x128xf32, #tpu.memory_space<vmem>>, vector<128x128xf32>
      tpu.vector_store %arg4[%c0_7, %c0_8], %13 {strides = array<i32>} : memref<128x128xf32, #tpu.memory_space<vmem>>, vector<128x128xf32>,
    } else {
    }
    return
  }
  func.func @transform_0(%arg0: i32, %arg1: i32) -> (i32, i32) {
    %c0_i32 = arith.constant 0 : i32
    return %arg0, %arg1 : i32, i32
  }
  func.func @transform_1(%arg0: i32, %arg1: i32) -> (i32, i32) {
    %c0_i32 = arith.constant 0 : i32
    %c0_i32_0 = arith.constant 0 : i32
    %c0_i32_1 = arith.constant 0 : i32
    return %c0_i32, %c0_i32_0 : i32, i32
  }
  func.func @transform_2(%arg0: i32, %arg1: i32) -> (i32, i32) {
    %c0_i32 = arith.constant 0 : i32
    %c0_i32_0 = arith.constant 0 : i32
    return %arg0, %c0_i32 : i32, i32
  }
}

</mosaic_0001>

<llo_original>
// kernel: tpu_custom_call.1
$region0: #{tpu_custom_call.1}
  #allocation0 [shape = 'u32[]', space=smem, size = 0x4, offset = 0x4, fixed_abs, tag = 'smem constant byte address 0x4 - core index']
  #allocation1 [shape = 'u32[144,128]{1,0:T(1,128)}', space=vmem, size = 0x12000, scoped, tag = 'internal scratch']
  %s0 = inlined_call_operand.hbm [shape: f32[128,128], index: 0, kind: input, shape index: {}]
  %s1 = inlined_call_operand.hbm [shape: f32[128,128], index: 1, kind: input, shape index: {}]
  %s2 = inlined_call_operand.hbm [shape: f32[128,128], index: 2, kind: output, shape index: {}]
  %s3 = sld [smem:[#allocation0]]
  $region34: #{tpu_custom_call.1} parent=0
    _
  %s5 = ssub.s32 1, %s3
  %s6 = scalar_select 0, %s5, %s3
  $region1: #{tpu_custom_call.1} parent=0
    #allocation2 [shape = 'u8[65536]{0}', space=vmem, size = 0x10000, scoped, tag = 'input window, operand 0, single buffered']
    #allocation3 [shape = 's32[1]{0}', space=sflag, size = 0x4, scoped, tag = 'scoped memory for tpu_custom_call.1']
    #allocation4 [shape = 's32[1]{0}', space=sflag, size = 0x4, scoped, tag = 'scoped memory for tpu_custom_call.1']
    #allocation5 [shape = 'u8[65536]{0}', space=vmem, size = 0x10000, scoped, tag = 'input window, operand 1, single buffered']
    #allocation6 [shape = 's32[1]{0}', space=sflag, size = 0x4, scoped, tag = 'scoped memory for tpu_custom_call.1']
    #allocation7 [shape = 'u8[65536]{0}', space=vmem, size = 0x10000, scoped, tag = 'output window, operand 0, single buffered']
    %7 = vsyncpa [#allocation3], 0
    %8 = vsyncpa [#allocation6], 0
    %9 = vsyncpa [#allocation4], 0
    // Predicated region
    $region2: #{tpu_custom_call.1} parent=1 // pred_check
      _
    $region3: #{tpu_custom_call.1} parent=1 // pred_check_branch
      %11 = sbr.rel (0) target = $region5
    $region4: #{tpu_custom_call.1} parent=1 // pred_region
      %s13 = ssub.s32 2048, 2048
      %14 = vsyncadd [#allocation3], %s13
      %s15 = sshll.u32 [#allocation2], 4
      %s16 = int_to_ptr.vmem [resolvable:$true] %s15
      %21 = dma.hbm_to_vmem [thread:$0]  %s0, 2048, %s16, [#allocation3], 128, 128, 8
    $region5: #{tpu_custom_call.1} parent=1 // pred_fallthru
      _
    // Predicated region
    $region6: #{tpu_custom_call.1} parent=1 // pred_check
      _
    $region7: #{tpu_custom_call.1} parent=1 // pred_check_branch
      %23 = sbr.rel (0) target = $region9
    $region8: #{tpu_custom_call.1} parent=1 // pred_region
      %s25 = ssub.s32 2048, 2048
      %26 = vsyncadd [#allocation6], %s25
      %s27 = sshll.u32 [#allocation5], 4
      %s28 = int_to_ptr.vmem [resolvable:$true] %s27
      %33 = dma.hbm_to_vmem [thread:$0]  %s1, 2048, %s28, [#allocation6], 128, 128, 8
    $region9: #{tpu_custom_call.1} parent=1 // pred_fallthru
      _
    // Predicated region
    $region10: #{tpu_custom_call.1} parent=1 // pred_check
      _
    $region11: #{tpu_custom_call.1} parent=1 // pred_check_branch
      %35 = sbr.rel (0) target = $region13
    $region12: #{tpu_custom_call.1} parent=1 // pred_region
      %36 = dma.done [#allocation3], 2048
    $region13: #{tpu_custom_call.1} parent=1 // pred_fallthru
      _
    // Predicated region
    $region14: #{tpu_custom_call.1} parent=1 // pred_check
      _
    $region15: #{tpu_custom_call.1} parent=1 // pred_check_branch
      %38 = sbr.rel (0) target = $region17
    $region16: #{tpu_custom_call.1} parent=1 // pred_region
      %39 = dma.done [#allocation6], 2048
    $region17: #{tpu_custom_call.1} parent=1 // pred_fallthru
      _
    %s40 = smul.u32 0, 128
    %s41 = scalar_lea.vmem [#allocation5], %s40
    %v42 = vld [vmem:[%s41] sm:$0xff]
    %v43 = vld [vmem:[%s41 + $0x8] sm:$0xff]
    %v44 = vld [vmem:[%s41 + $0x10] sm:$0xff]
    %v45 = vld [vmem:[%s41 + $0x18] sm:$0xff]
    %v46 = vld [vmem:[%s41 + $0x20] sm:$0xff]
    %v47 = vld [vmem:[%s41 + $0x28] sm:$0xff]
    %v48 = vld [vmem:[%s41 + $0x30] sm:$0xff]
    %v49 = vld [vmem:[%s41 + $0x38] sm:$0xff]
    %v50 = vld [vmem:[%s41 + $0x40] sm:$0xff]
    %v51 = vld [vmem:[%s41 + $0x48] sm:$0xff]
    %v52 = vld [vmem:[%s41 + $0x50] sm:$0xff]
    %v53 = vld [vmem:[%s41 + $0x58] sm:$0xff]
    %v54 = vld [vmem:[%s41 + $0x60] sm:$0xff]
    %v55 = vld [vmem:[%s41 + $0x68] sm:$0xff]
    %v56 = vld [vmem:[%s41 + $0x70] sm:$0xff]
    %v57 = vld [vmem:[%s41 + $0x78] sm:$0xff]
    %v58 = vld [vmem:[#allocation2] sm:$0xff]
    %v59 = vld [vmem:[#allocation2 + $0x8] sm:$0xff]
    %v60 = vld [vmem:[#allocation2 + $0x10] sm:$0xff]
    %v61 = vld [vmem:[#allocation2 + $0x18] sm:$0xff]
    %v62 = vld [vmem:[#allocation2 + $0x20] sm:$0xff]
    %v63 = vld [vmem:[#allocation2 + $0x28] sm:$0xff]
    %v64 = vld [vmem:[#allocation2 + $0x30] sm:$0xff]
    %v65 = vld [vmem:[#allocation2 + $0x38] sm:$0xff]
    %v66 = vld [vmem:[#allocation2 + $0x40] sm:$0xff]
    %v67 = vld [vmem:[#allocation2 + $0x48] sm:$0xff]
    %v68 = vld [vmem:[#allocation2 + $0x50] sm:$0xff]
    %v69 = vld [vmem:[#allocation2 + $0x58] sm:$0xff]
    %v70 = vld [vmem:[#allocation2 + $0x60] sm:$0xff]
    %v71 = vld [vmem:[#allocation2 + $0x68] sm:$0xff]
    %v72 = vld [vmem:[#allocation2 + $0x70] sm:$0xff]
    %v73 = vld [vmem:[#allocation2 + $0x78] sm:$0xff]
    %74 = vmatprep.subr.mxu0 0.0
    %75 = vmatpush1.msra.mxu0 %v57
    %76 = vmatprep.subr.mxu0 0.0
    %77 = vmatpush1.msra.mxu0 %v56
    %78 = vmatprep.subr.mxu0 0.0
    %79 = vmatpush1.msra.mxu0 %v55
    %80 = vmatprep.subr.mxu0 0.0
    %81 = vmatpush1.msra.mxu0 %v54
    %82 = vmatprep.subr.mxu0 0.0
    %83 = vmatpush1.msra.mxu0 %v53
    %84 = vmatprep.subr.mxu0 0.0
    %85 = vmatpush1.msra.mxu0 %v52
    %86 = vmatprep.subr.mxu0 0.0
    %87 = vmatpush1.msra.mxu0 %v51
    %88 = vmatprep.subr.mxu0 0.0
    %89 = vmatpush1.msra.mxu0 %v50
    %90 = vmatprep.subr.mxu0 0.0
    %91 = vmatpush1.msra.mxu0 %v49
    %92 = vmatprep.subr.mxu0 0.0
    %93 = vmatpush1.msra.mxu0 %v48
    %94 = vmatprep.subr.mxu0 0.0
    %95 = vmatpush1.msra.mxu0 %v47
    %96 = vmatprep.subr.mxu0 0.0
    %97 = vmatpush1.msra.mxu0 %v46
    %98 = vmatprep.subr.mxu0 0.0
    %99 = vmatpush1.msra.mxu0 %v45
    %100 = vmatprep.subr.mxu0 0.0
    %101 = vmatpush1.msra.mxu0 %v44
    %102 = vmatprep.subr.mxu0 0.0
    %103 = vmatpush1.msra.mxu0 %v43
    %104 = vmatprep.subr.mxu0 0.0
    %105 = vmatpush1.msra.mxu0 %v42
    %106 = vmatprep.subr.mxu0 0.0
    %107 = vmatpush2.msra.mxu0 0.0
    %108 = vmatprep.subr.mxu0 0.0
    %109 = vmatpush2.msra.mxu0 0.0
    %110 = vmatprep.subr.mxu0 0.0
    %111 = vmatpush2.msra.mxu0 0.0
    %112 = vmatprep.subr.mxu0 0.0
    %113 = vmatpush2.msra.mxu0 0.0
    %114 = vmatprep.subr.mxu0 0.0
    %115 = vmatpush2.msra.mxu0 0.0
    %116 = vmatprep.subr.mxu0 0.0
    %117 = vmatpush2.msra.mxu0 0.0
    %118 = vmatprep.subr.mxu0 0.0
    %119 = vmatpush2.msra.mxu0 0.0
    %120 = vmatprep.subr.mxu0 0.0
    %121 = vmatpush2.msra.mxu0 0.0
    %122 = vmatprep.subr.mxu0 0.0
    %123 = vmatpush2.msra.mxu0 0.0
    %124 = vmatprep.subr.mxu0 0.0
    %125 = vmatpush2.msra.mxu0 0.0
    %126 = vmatprep.subr.mxu0 0.0
    %127 = vmatpush2.msra.mxu0 0.0
    %128 = vmatprep.subr.mxu0 0.0
    %129 = vmatpush2.msra.mxu0 0.0
    %130 = vmatprep.subr.mxu0 0.0
    %131 = vmatpush2.msra.mxu0 0.0
    %132 = vmatprep.subr.mxu0 0.0
    %133 = vmatpush2.msra.mxu0 0.0
    %134 = vmatprep.subr.mxu0 0.0
    %135 = vmatpush2.msra.mxu0 0.0
    %136 = vmatprep.subr.mxu0 0.0
    %137 = vmatpush2.msra.mxu0 0.0
    %138 = vmatprep.mubr.f32.mxu0 0.0
    %139 = vmatmul.mubr.f32.gmra.mxu0 %v58
    %v140 = vpop.f32.mrf.mxu0
    %v141 = vadd.f32 0.0, %v140
    %v142 = vpop.f32.mrf.mxu0
    %143 = vmatprep.mubr.f32.mxu0 0.0
    %144 = vmatmul.mubr.f32.gmra.mxu0 %v59
    %v145 = vpop.f32.mrf.mxu0
    %v146 = vadd.f32 0.0, %v145
    %v147 = vpop.f32.mrf.mxu0
    %148 = vmatprep.mubr.f32.mxu0 0.0
    %149 = vmatmul.mubr.f32.gmra.mxu0 %v60
    %v150 = vpop.f32.mrf.mxu0
    %v151 = vadd.f32 0.0, %v150
    %v152 = vpop.f32.mrf.mxu0
    %153 = vmatprep.mubr.f32.mxu0 0.0
    %154 = vmatmul.mubr.f32.gmra.mxu0 %v61
    %v155 = vpop.f32.mrf.mxu0
    %v156 = vadd.f32 0.0, %v155
    %v157 = vpop.f32.mrf.mxu0
    %158 = vmatprep.mubr.f32.mxu0 0.0
    %159 = vmatmul.mubr.f32.gmra.mxu0 %v62
    %v160 = vpop.f32.mrf.mxu0
    %v161 = vadd.f32 0.0, %v160
    %v162 = vpop.f32.mrf.mxu0
    %163 = vmatprep.mubr.f32.mxu0 0.0
    %164 = vmatmul.mubr.f32.gmra.mxu0 %v63
    %v165 = vpop.f32.mrf.mxu0
    %v166 = vadd.f32 0.0, %v165
    %v167 = vpop.f32.mrf.mxu0
    %168 = vmatprep.mubr.f32.mxu0 0.0
    %169 = vmatmul.mubr.f32.gmra.mxu0 %v64
    %v170 = vpop.f32.mrf.mxu0
    %v171 = vadd.f32 0.0, %v170
    %v172 = vpop.f32.mrf.mxu0
    %173 = vmatprep.mubr.f32.mxu0 0.0
    %174 = vmatmul.mubr.f32.gmra.mxu0 %v65
    %v175 = vpop.f32.mrf.mxu0
    %v176 = vadd.f32 0.0, %v175
    %v177 = vpop.f32.mrf.mxu0
    %178 = vmatprep.mubr.f32.mxu0 0.0
    %179 = vmatmul.mubr.f32.gmra.mxu0 %v66
    %v180 = vpop.f32.mrf.mxu0
    %v181 = vadd.f32 0.0, %v180
    %v182 = vpop.f32.mrf.mxu0
    %183 = vmatprep.mubr.f32.mxu0 0.0
    %184 = vmatmul.mubr.f32.gmra.mxu0 %v67
    %v185 = vpop.f32.mrf.mxu0
    %v186 = vadd.f32 0.0, %v185
    %v187 = vpop.f32.mrf.mxu0
    %188 = vmatprep.mubr.f32.mxu0 0.0
    %189 = vmatmul.mubr.f32.gmra.mxu0 %v68
    %v190 = vpop.f32.mrf.mxu0
    %v191 = vadd.f32 0.0, %v190
    %v192 = vpop.f32.mrf.mxu0
    %193 = vmatprep.mubr.f32.mxu0 0.0
    %194 = vmatmul.mubr.f32.gmra.mxu0 %v69
    %v195 = vpop.f32.mrf.mxu0
    %v196 = vadd.f32 0.0, %v195
    %v197 = vpop.f32.mrf.mxu0
    %198 = vmatprep.mubr.f32.mxu0 0.0
    %199 = vmatmul.mubr.f32.gmra.mxu0 %v70
    %v200 = vpop.f32.mrf.mxu0
    %v201 = vadd.f32 0.0, %v200
    %v202 = vpop.f32.mrf.mxu0
    %203 = vmatprep.mubr.f32.mxu0 0.0
    %204 = vmatmul.mubr.f32.gmra.mxu0 %v71
    %v205 = vpop.f32.mrf.mxu0
    %v206 = vadd.f32 0.0, %v205
    %v207 = vpop.f32.mrf.mxu0
    %208 = vmatprep.mubr.f32.mxu0 0.0
    %209 = vmatmul.mubr.f32.gmra.mxu0 %v72
    %v210 = vpop.f32.mrf.mxu0
    %v211 = vadd.f32 0.0, %v210
    %v212 = vpop.f32.mrf.mxu0
    %213 = vmatprep.mubr.f32.mxu0 0.0
    %214 = vmatmul.mubr.f32.gmra.mxu0 %v73
    %v215 = vpop.f32.mrf.mxu0
    %v216 = vadd.f32 0.0, %v215
    %v217 = vpop.f32.mrf.mxu0
    %218 = vdwg.mxu0
    %p219 = scmp.eq.s32.totalorder 0, 0
    // Predicated region
    $region18: #{tpu_custom_call.1} parent=1 // pred_check
      %p220 = pneg %p219
    $region19: #{tpu_custom_call.1} parent=1 // pred_check_branch
      %222 = sbr.rel (%p220) target = $region21
    $region20: #{tpu_custom_call.1} parent=1 // pred_region
      %223 = vst [vmem:[#allocation7] sm:$0xff] %v141
      %224 = vst [vmem:[#allocation7 + $0x8] sm:$0xff] %v146
      %225 = vst [vmem:[#allocation7 + $0x10] sm:$0xff] %v151
      %226 = vst [vmem:[#allocation7 + $0x18] sm:$0xff] %v156
      %227 = vst [vmem:[#allocation7 + $0x20] sm:$0xff] %v161
      %228 = vst [vmem:[#allocation7 + $0x28] sm:$0xff] %v166
      %229 = vst [vmem:[#allocation7 + $0x30] sm:$0xff] %v171
      %230 = vst [vmem:[#allocation7 + $0x38] sm:$0xff] %v176
      %231 = vst [vmem:[#allocation7 + $0x40] sm:$0xff] %v181
      %232 = vst [vmem:[#allocation7 + $0x48] sm:$0xff] %v186
      %233 = vst [vmem:[#allocation7 + $0x50] sm:$0xff] %v191
      %234 = vst [vmem:[#allocation7 + $0x58] sm:$0xff] %v196
      %235 = vst [vmem:[#allocation7 + $0x60] sm:$0xff] %v201
      %236 = vst [vmem:[#allocation7 + $0x68] sm:$0xff] %v206
      %237 = vst [vmem:[#allocation7 + $0x70] sm:$0xff] %v211
      %238 = vst [vmem:[#allocation7 + $0x78] sm:$0xff] %v216
    $region21: #{tpu_custom_call.1} parent=1 // pred_fallthru
      _
    %p239 = scmp.gt.s32.totalorder 0, 0
    // Predicated region
    $region22: #{tpu_custom_call.1} parent=1 // pred_check
      %p240 = pneg %p239
    $region23: #{tpu_custom_call.1} parent=1 // pred_check_branch
      %242 = sbr.rel (%p240) target = $region25
    $region24: #{tpu_custom_call.1} parent=1 // pred_region
      %v243 = vld [vmem:[#allocation7] sm:$0xff]
      %v244 = vld [vmem:[#allocation7 + $0x8] sm:$0xff]
      %v245 = vld [vmem:[#allocation7 + $0x10] sm:$0xff]
      %v246 = vld [vmem:[#allocation7 + $0x18] sm:$0xff]
      %v247 = vld [vmem:[#allocation7 + $0x20] sm:$0xff]
      %v248 = vld [vmem:[#allocation7 + $0x28] sm:$0xff]
      %v249 = vld [vmem:[#allocation7 + $0x30] sm:$0xff]
      %v250 = vld [vmem:[#allocation7 + $0x38] sm:$0xff]
      %v251 = vld [vmem:[#allocation7 + $0x40] sm:$0xff]
      %v252 = vld [vmem:[#allocation7 + $0x48] sm:$0xff]
      %v253 = vld [vmem:[#allocation7 + $0x50] sm:$0xff]
      %v254 = vld [vmem:[#allocation7 + $0x58] sm:$0xff]
      %v255 = vld [vmem:[#allocation7 + $0x60] sm:$0xff]
      %v256 = vld [vmem:[#allocation7 + $0x68] sm:$0xff]
      %v257 = vld [vmem:[#allocation7 + $0x70] sm:$0xff]
      %v258 = vld [vmem:[#allocation7 + $0x78] sm:$0xff]
      %v259 = vadd.f32 %v243, %v141
      %v260 = vadd.f32 %v244, %v146
      %v261 = vadd.f32 %v245, %v151
      %v262 = vadd.f32 %v246, %v156
      %v263 = vadd.f32 %v247, %v161
      %v264 = vadd.f32 %v248, %v166
      %v265 = vadd.f32 %v249, %v171
      %v266 = vadd.f32 %v250, %v176
      %v267 = vadd.f32 %v251, %v181
      %v268 = vadd.f32 %v252, %v186
      %v269 = vadd.f32 %v253, %v191
      %v270 = vadd.f32 %v254, %v196
      %v271 = vadd.f32 %v255, %v201
      %v272 = vadd.f32 %v256, %v206
      %v273 = vadd.f32 %v257, %v211
      %v274 = vadd.f32 %v258, %v216
      %275 = vst [vmem:[#allocation7] sm:$0xff] %v259
      %276 = vst [vmem:[#allocation7 + $0x8] sm:$0xff] %v260
      %277 = vst [vmem:[#allocation7 + $0x10] sm:$0xff] %v261
      %278 = vst [vmem:[#allocation7 + $0x18] sm:$0xff] %v262
      %279 = vst [vmem:[#allocation7 + $0x20] sm:$0xff] %v263
      %280 = vst [vmem:[#allocation7 + $0x28] sm:$0xff] %v264
      %281 = vst [vmem:[#allocation7 + $0x30] sm:$0xff] %v265
      %282 = vst [vmem:[#allocation7 + $0x38] sm:$0xff] %v266
      %283 = vst [vmem:[#allocation7 + $0x40] sm:$0xff] %v267
      %284 = vst [vmem:[#allocation7 + $0x48] sm:$0xff] %v268
      %285 = vst [vmem:[#allocation7 + $0x50] sm:$0xff] %v269
      %286 = vst [vmem:[#allocation7 + $0x58] sm:$0xff] %v270
      %287 = vst [vmem:[#allocation7 + $0x60] sm:$0xff] %v271
      %288 = vst [vmem:[#allocation7 + $0x68] sm:$0xff] %v272
      %289 = vst [vmem:[#allocation7 + $0x70] sm:$0xff] %v273
      %290 = vst [vmem:[#allocation7 + $0x78] sm:$0xff] %v274
    $region25: #{tpu_custom_call.1} parent=1 // pred_fallthru
      _
    // Predicated region
    $region26: #{tpu_custom_call.1} parent=1 // pred_check
      _
    $region27: #{tpu_custom_call.1} parent=1 // pred_check_branch
      %292 = sbr.rel (0) target = $region29
    $region28: #{tpu_custom_call.1} parent=1 // pred_region
      %s294 = ssub.s32 2048, 2048
      %295 = vsyncadd [#allocation4], %s294
      %s296 = sshll.u32 [#allocation7], 4
      %s297 = int_to_ptr.vmem [resolvable:$true] %s296
      %302 = dma.vmem_to_hbm [thread:$0]  %s297, 2048, %s2, [#allocation4], 128, 128, 8
    $region29: #{tpu_custom_call.1} parent=1 // pred_fallthru
      _
    // Predicated region
    $region30: #{tpu_custom_call.1} parent=1 // pred_check
      _
    $region31: #{tpu_custom_call.1} parent=1 // pred_check_branch
      %304 = sbr.rel (0) target = $region33
    $region32: #{tpu_custom_call.1} parent=1 // pred_region
      %305 = dma.done [#allocation4], 2048
    $region33: #{tpu_custom_call.1} parent=1 // pred_fallthru
      _
    %306 = vsyncpa [#allocation3], 1
    %307 = vsyncpa [#allocation6], 1
    %308 = vsyncpa [#allocation4], 1

</llo_original>
